<compile_context>
chip_gen: v5e
topology: v5e:2x2
jax: 0.10.0
libtpu: 0.0.40
codegen_flags: <defaults>
</compile_context>

<pallas_src>
import jax
import jax.numpy as jnp
from jax import lax
from jax.experimental import pallas as pl
from jax.experimental.pallas import tpu as pltpu


def _make_linear_kernel(tk, k_valid, mask_tail, acc_in_out):
    """Build the kernel body.

    tk        : K-tile size (static)
    k_valid   : true (unpadded) K extent (static)
    mask_tail : statically True iff the last K tile is partial and must be masked
    acc_in_out: statically True iff we accumulate directly into o_ref (f32 output)
    """

    def kernel(x_ref, w_ref, b_ref, o_ref, *scratch):
        # x_ref: (TB, TK)  w_ref: (N, TK)  b_ref: (1, N)  o_ref: (TB, N)
        k = pl.program_id(1)
        acc_ref = o_ref if acc_in_out else scratch[0]

        @pl.when(k == 0)
        def _init():
            acc_ref[...] = jnp.zeros_like(acc_ref)

        x = x_ref[...]
        if mask_tail:
            # Mask out-of-range K columns (only the last tile actually has any);
            # jnp.where (not multiply) so OOB garbage / NaN cannot leak.
            col = lax.broadcasted_iota(jnp.int32, x.shape, 1) + k * tk
            x = jnp.where(col < k_valid, x, jnp.zeros_like(x))

        # Contract the K (lane) axis of both operands: (TB, TK) x (N, TK) -> (TB, N).
        acc_ref[...] += lax.dot_general(
            x, w_ref[...],
            dimension_numbers=(((1,), (1,)), ((), ())),
            preferred_element_type=jnp.float32,
        ).astype(acc_ref.dtype)

        @pl.when(k == pl.num_programs(1) - 1)
        def _finalize():
            if acc_in_out:
                o_ref[...] = o_ref[...] + b_ref[...].astype(o_ref.dtype)
            else:
                o_ref[...] = (acc_ref[...] + b_ref[...]).astype(o_ref.dtype)

    return kernel


def risk_prediction_head(x_nchw, w_torch, b, *, tb_max=256, tk_max=8192):
    """Pallas implementation of RiskPredictionHead.forward.

    x_nchw : (B, C, H, W)           float32 or bfloat16
    w_torch: (num_classes, K)       PyTorch nn.Linear weight layout, kept as-is
    b      : (num_classes,)
    returns: (B, num_classes) in x's dtype
    """
    B = x_nchw.shape[0]
    x_flat = x_nchw.reshape(B, -1)          # glue: x.view(B, -1)
    K = x_flat.shape[1]
    N = w_torch.shape[0]
    assert w_torch.shape[1] == K, "flattened feature dim must match fc.in_features"
    out_dtype = x_flat.dtype

    # ---- Clamp caller-supplied tile caps so block shapes always satisfy the
    #      (8, 128) divisibility rule.
    tb_max = max(8, (tb_max // 8) * 8)
    tk_max = max(128, (tk_max // 128) * 128)

    # ---- B tile: aim for >= 2 grid steps along the "parallel" B axis so both
    #      v7x TensorCores get work; edge rows are read as garbage but masked on store.
    if B <= tb_max:
        TB = max(8, ((-(-B // 2)) + 7) // 8 * 8)   # round_up(ceil(B/2), 8)
        if TB >= B:
            TB = B                                  # can't usefully split; full extent
    else:
        TB = tb_max

    # ---- K tile: K is the reduction axis. Full extent if it fits, otherwise a
    #      multiple-of-128 tile with in-kernel masking of the partial last tile.
    if K <= tk_max:
        TK = K
        mask_tail = False
    else:
        TK = tk_max
        mask_tail = (K % TK) != 0

    grid = (pl.cdiv(B, TB), pl.cdiv(K, TK))

    # Zero-pad only the tiny weight so every (N, TK) weight block is in-bounds;
    # x is never padded (it is the bandwidth-dominant stream).
    k_pad_total = grid[1] * TK
    if k_pad_total > K:
        w_torch = jnp.pad(w_torch, ((0, 0), (0, k_pad_total - K)))

    b_2d = b.reshape(1, N)

    acc_in_out = jnp.dtype(out_dtype) == jnp.dtype(jnp.float32)
    scratch_shapes = [] if acc_in_out else [pltpu.VMEM((TB, N), jnp.float32)]

    # VMEM budget: double-buffered x / w / out blocks (+ scratch + slack),
    # clamped to 48 MiB (safe on v7x's 64 MiB physical VMEM).
    x_bytes = TB * TK * jnp.dtype(x_flat.dtype).itemsize
    w_bytes = N * TK * jnp.dtype(w_torch.dtype).itemsize
    o_bytes = TB * N * jnp.dtype(out_dtype).itemsize
    need = 2 * (x_bytes + w_bytes + o_bytes) + TB * N * 4 + (2 << 20)
    vmem_limit = int(min(48 * 1024 * 1024, max(32 * 1024 * 1024, need)))

    kernel = _make_linear_kernel(TK, K, mask_tail, acc_in_out)

    out = pl.pallas_call(
        kernel,
        out_shape=jax.ShapeDtypeStruct((B, N), out_dtype),
        grid=grid,
        in_specs=[
            # x: streamed per (B tile, K tile) -- the only bandwidth-relevant stream.
            pl.BlockSpec((TB, TK), lambda i, k: (i, k)),
            # w: lane-dense (N, K_pad); only the K coordinate varies.
            pl.BlockSpec((N, TK), lambda i, k: (0, k)),
            # bias: fully resident.
            pl.BlockSpec((1, N), lambda i, k: (0, 0)),
        ],
        out_specs=pl.BlockSpec((TB, N), lambda i, k: (i, 0)),
        scratch_shapes=scratch_shapes,
        compiler_params=pltpu.CompilerParams(
            dimension_semantics=("parallel", "arbitrary"),
            vmem_limit_bytes=vmem_limit,
        ),
    )(x_flat, w_torch, b_2d)
    return out


if __name__ == "__main__":
    key = jax.random.PRNGKey(0)
    k_x, k_w, k_b, k_x2 = jax.random.split(key, 4)

    # TODO(synk): the PyTorch module's debug print() of tensor shapes is host-side
    # logging with no kernel equivalent; it is intentionally omitted.

    # --- Test 1: small shapes consistent with the module (K = C*H*W = fc.in_features).
    B, C, H, W = 2, 32, 4, 4
    K = C * H * W            # 512
    num_classes = 2

    x = jax.random.normal(k_x, (B, C, H, W), dtype=jnp.float32)
    w_torch = jax.random.normal(k_w, (num_classes, K), dtype=jnp.float32) * 0.02
    b = jax.random.normal(k_b, (num_classes,), dtype=jnp.float32) * 0.02
    y_ref = x.reshape(B, -1) @ w_torch.T + b

    y = jax.block_until_ready(risk_prediction_head(x, w_torch, b))
    assert y.shape == (B, num_classes)
    assert jnp.allclose(y, y_ref, atol=1e-4, rtol=1e-4), "mismatch (single K block)"

    # --- Test 2: force the multi-step K reduction (4 tiles of 128) to exercise
    #     the resident-output accumulator init / finalize logic.
    y2 = jax.block_until_ready(risk_prediction_head(x, w_torch, b, tk_max=128))
    assert jnp.allclose(y2, y_ref, atol=1e-4, rtol=1e-4), "mismatch (tiled K)"

    # --- Test 3: B split across two B tiles (grid[0]=2) and a K that is NOT a
    #     multiple of TK, exercising the in-kernel tail-column masking path.
    B3, C3, H3, W3 = 16, 8, 5, 5
    K3 = C3 * H3 * W3        # 200
    x3 = jax.random.normal(k_x2, (B3, C3, H3, W3), dtype=jnp.float32)
    w3 = jax.random.normal(k_w, (num_classes, K3), dtype=jnp.float32) * 0.02
    b3 = jax.random.normal(k_b, (num_classes,), dtype=jnp.float32) * 0.02
    y3_ref = x3.reshape(B3, -1) @ w3.T + b3
    y3 = jax.block_until_ready(risk_prediction_head(x3, w3, b3, tk_max=128))
    assert y3.shape == (B3, num_classes)
    assert jnp.allclose(y3, y3_ref, atol=1e-4, rtol=1e-4), "mismatch (masked K tail)"

    print("KERNEL_OK")
</pallas_src>

<mosaic_0001>
module attributes {stable_mosaic.version = 11 : i64} {
  func.func @kernel(%arg0: i32, %arg1: i32, %arg2: memref<2x512xf32, #tpu.memory_space<vmem>>, %arg3: memref<2x512xf32, #tpu.memory_space<vmem>>, %arg4: memref<1x2xf32, #tpu.memory_space<vmem>>, %arg5: memref<2x2xf32, #tpu.memory_space<vmem>>) attributes {dimension_semantics = [#tpu.dimension_semantics<parallel>, #tpu.dimension_semantics<arbitrary>], iteration_bounds = array<i64: 1, 1>, scalar_prefetch = 0 : i64, scratch_operands = 0 : i64, tpu.core_type = #tpu.core_type<tc>, window_params = [{transform_indices = @transform_0, window_bounds = array<i64: 2, 512>}, {transform_indices = @transform_1, window_bounds = array<i64: 2, 512>}, {pipeline_mode = #tpu.pipeline_mode<synchronous>, transform_indices = @transform_2, window_bounds = array<i64: 1, 2>}, {transform_indices = @transform_3, window_bounds = array<i64: 2, 2>}]} {
    %c0_i32 = arith.constant 0 : i32
    %0 = arith.cmpi eq, %arg1, %c0_i32 : i32
    %1 = arith.extui %0 : i1 to i32
    %c0_i32_0 = arith.constant 0 : i32
    %2 = arith.cmpi ne, %1, %c0_i32_0 : i32
    scf.if %2 {
      %cst_10 = arith.constant 0.000000e+00 : f32
      %12 = vector.broadcast %cst_10 : f32 to vector<2x2xf32>
      %c0_11 = arith.constant 0 : index
      %c0_12 = arith.constant 0 : index
      %13 = vector.load %arg5[%c0_11, %c0_12] : memref<2x2xf32, #tpu.memory_space<vmem>>, vector<2x2xf32>
      tpu.vector_store %arg5[%c0_11, %c0_12], %12 {strides = array<i32>} : memref<2x2xf32, #tpu.memory_space<vmem>>, vector<2x2xf32>,
    } else {
    }
    %c0 = arith.constant 0 : index
    %c0_1 = arith.constant 0 : index
    %3 = vector.load %arg2[%c0, %c0_1] : memref<2x512xf32, #tpu.memory_space<vmem>>, vector<2x512xf32>
    %c0_2 = arith.constant 0 : index
    %c0_3 = arith.constant 0 : index
    %4 = vector.load %arg5[%c0_2, %c0_3] : memref<2x2xf32, #tpu.memory_space<vmem>>, vector<2x2xf32>
    %c0_4 = arith.constant 0 : index
    %c0_5 = arith.constant 0 : index
    %5 = vector.load %arg3[%c0_4, %c0_5] : memref<2x512xf32, #tpu.memory_space<vmem>>, vector<2x512xf32>
    %cst = arith.constant dense<0.000000e+00> : vector<2x2xf32>
    %6 = tpu.matmul %3, %5, %cst {dimension_numbers = #tpu.dot_dimension_numbers<[1], [1], [0], [0], [0, 0, 1, 0], [], []>} : vector<2x512xf32>, vector<2x512xf32>, vector<2x2xf32> -> vector<2x2xf32>
    %7 = arith.addf %4, %6 : vector<2x2xf32>
    %c0_6 = arith.constant 0 : index
    %c0_7 = arith.constant 0 : index
    %8 = vector.load %arg5[%c0_6, %c0_7] : memref<2x2xf32, #tpu.memory_space<vmem>>, vector<2x2xf32>
    tpu.vector_store %arg5[%c0_6, %c0_7], %7 {strides = array<i32>} : memref<2x2xf32, #tpu.memory_space<vmem>>, vector<2x2xf32>,
    %c0_i32_8 = arith.constant 0 : i32
    %9 = arith.cmpi eq, %arg1, %c0_i32_8 : i32
    %10 = arith.extui %9 : i1 to i32
    %c0_i32_9 = arith.constant 0 : i32
    %11 = arith.cmpi ne, %10, %c0_i32_9 : i32
    scf.if %11 {
      %c0_10 = arith.constant 0 : index
      %c0_11 = arith.constant 0 : index
      %12 = vector.load %arg5[%c0_10, %c0_11] : memref<2x2xf32, #tpu.memory_space<vmem>>, vector<2x2xf32>
      %c0_12 = arith.constant 0 : index
      %c0_13 = arith.constant 0 : index
      %13 = vector.load %arg4[%c0_12, %c0_13] : memref<1x2xf32, #tpu.memory_space<vmem>>, vector<1x2xf32>
      %14 = vector.broadcast %13 : vector<1x2xf32> to vector<2x2xf32>
      %15 = arith.addf %12, %14 : vector<2x2xf32>
      %c0_14 = arith.constant 0 : index
      %c0_15 = arith.constant 0 : index
      %16 = vector.load %arg5[%c0_14, %c0_15] : memref<2x2xf32, #tpu.memory_space<vmem>>, vector<2x2xf32>
      tpu.vector_store %arg5[%c0_14, %c0_15], %15 {strides = array<i32>} : memref<2x2xf32, #tpu.memory_space<vmem>>, vector<2x2xf32>,
    } else {
    }
    return
  }
  func.func @transform_0(%arg0: i32, %arg1: i32) -> (i32, i32) {
    %c0_i32 = arith.constant 0 : i32
    return %arg0, %arg1 : i32, i32
  }
  func.func @transform_1(%arg0: i32, %arg1: i32) -> (i32, i32) {
    %c0_i32 = arith.constant 0 : i32
    %c0_i32_0 = arith.constant 0 : i32
    return %c0_i32, %arg1 : i32, i32
  }
  func.func @transform_2(%arg0: i32, %arg1: i32) -> (i32, i32) {
    %c0_i32 = arith.constant 0 : i32
    %c0_i32_0 = arith.constant 0 : i32
    %c0_i32_1 = arith.constant 0 : i32
    return %c0_i32, %c0_i32_0 : i32, i32
  }
  func.func @transform_3(%arg0: i32, %arg1: i32) -> (i32, i32) {
    %c0_i32 = arith.constant 0 : i32
    %c0_i32_0 = arith.constant 0 : i32
    return %arg0, %c0_i32 : i32, i32
  }
}

</mosaic_0001>

<llo_original>
// kernel: tpu_custom_call.1
$region0: #{tpu_custom_call.1}
  #allocation0 [shape = 'u32[]', space=smem, size = 0x4, offset = 0x4, fixed_abs, tag = 'smem constant byte address 0x4 - core index']
  #allocation1 [shape = 'u32[72,128]{1,0:T(1,128)}', space=vmem, size = 0x9000, scoped, tag = 'internal scratch']
  %s0 = inlined_call_operand.hbm [shape: f32[2,512], index: 0, kind: input, shape index: {}]
  %s1 = inlined_call_operand.hbm [shape: f32[2,512], index: 1, kind: input, shape index: {}]
  %s2 = inlined_call_operand.vmem [shape: f32[1,2], index: 2, kind: input, shape index: {}]
  %s3 = inlined_call_operand.hbm [shape: f32[2,2], index: 3, kind: output, shape index: {}]
  %s4 = sld [smem:[#allocation0]]
  $region38: #{tpu_custom_call.1} parent=0
    _
  %s6 = ssub.s32 1, %s4
  %s7 = scalar_select 0, %s6, %s4
  $region1: #{tpu_custom_call.1} parent=0
    #allocation2 [shape = 'u8[4096]{0}', space=vmem, size = 0x1000, scoped, tag = 'input window, operand 0, single buffered']
    #allocation3 [shape = 's32[1]{0}', space=sflag, size = 0x4, scoped, tag = 'scoped memory for tpu_custom_call.1']
    #allocation4 [shape = 's32[1]{0}', space=sflag, size = 0x4, scoped, tag = 'scoped memory for tpu_custom_call.1']
    #allocation5 [shape = 'u8[4096]{0}', space=vmem, size = 0x1000, scoped, tag = 'input window, operand 1, single buffered']
    #allocation6 [shape = 's32[1]{0}', space=sflag, size = 0x4, scoped, tag = 'scoped memory for tpu_custom_call.1']
    #allocation7 [shape = 'u8[1024]{0}', space=vmem, size = 0x400, scoped, tag = 'output window, operand 0, single buffered']
    %8 = vsyncpa [#allocation3], 0
    %9 = vsyncpa [#allocation6], 0
    %10 = vsyncpa [#allocation4], 0
    // Predicated region
    $region2: #{tpu_custom_call.1} parent=1 // pred_check
      _
    $region3: #{tpu_custom_call.1} parent=1 // pred_check_branch
      %12 = sbr.rel (0) target = $region5
    $region4: #{tpu_custom_call.1} parent=1 // pred_region
      %14 = vsyncadd [#allocation3], 0
      %s16 = sshll.u32 %s0, 4
      %s17 = int_to_ptr.hbm [resolvable:$true] %s16
      %s18 = sshll.u32 [#allocation2], 4
      %s19 = int_to_ptr.vmem [resolvable:$true] %s18
      %21 = dma.hbm_to_vmem [thread:$0]  %s17, 128, %s19, [#allocation3]
    $region5: #{tpu_custom_call.1} parent=1 // pred_fallthru
      _
    // Predicated region
    $region6: #{tpu_custom_call.1} parent=1 // pred_check
      _
    $region7: #{tpu_custom_call.1} parent=1 // pred_check_branch
      %23 = sbr.rel (0) target = $region9
    $region8: #{tpu_custom_call.1} parent=1 // pred_region
      %25 = vsyncadd [#allocation6], 0
      %s27 = sshll.u32 %s1, 4
      %s28 = int_to_ptr.hbm [resolvable:$true] %s27
      %s29 = sshll.u32 [#allocation5], 4
      %s30 = int_to_ptr.vmem [resolvable:$true] %s29
      %32 = dma.hbm_to_vmem [thread:$0]  %s28, 128, %s30, [#allocation6]
    $region9: #{tpu_custom_call.1} parent=1 // pred_fallthru
      _
    // Predicated region
    $region10: #{tpu_custom_call.1} parent=1 // pred_check
      _
    $region11: #{tpu_custom_call.1} parent=1 // pred_check_branch
      %34 = sbr.rel (0) target = $region13
    $region12: #{tpu_custom_call.1} parent=1 // pred_region
      _
    $region13: #{tpu_custom_call.1} parent=1 // pred_fallthru
      _
    // Predicated region
    $region14: #{tpu_custom_call.1} parent=1 // pred_check
      _
    $region15: #{tpu_custom_call.1} parent=1 // pred_check_branch
      %36 = sbr.rel (0) target = $region17
    $region16: #{tpu_custom_call.1} parent=1 // pred_region
      %38 = dma.done [#allocation3], 128
    $region17: #{tpu_custom_call.1} parent=1 // pred_fallthru
      _
    // Predicated region
    $region18: #{tpu_custom_call.1} parent=1 // pred_check
      _
    $region19: #{tpu_custom_call.1} parent=1 // pred_check_branch
      %40 = sbr.rel (0) target = $region21
    $region20: #{tpu_custom_call.1} parent=1 // pred_region
      %42 = dma.done [#allocation6], 128
    $region21: #{tpu_custom_call.1} parent=1 // pred_fallthru
      _
    %p43 = scmp.eq.s32.totalorder 0, 0
    // Predicated region
    $region22: #{tpu_custom_call.1} parent=1 // pred_check
      %p44 = pneg %p43
    $region23: #{tpu_custom_call.1} parent=1 // pred_check_branch
      %46 = sbr.rel (%p44) target = $region25
    $region24: #{tpu_custom_call.1} parent=1 // pred_region
      %vm47 = vcmask 9216
      %48 = vst.msk [vmem:[#allocation7] sm:$0x3] %vm47, 0.0
    $region25: #{tpu_custom_call.1} parent=1 // pred_fallthru
      _
    %v49 = vld [vmem:[#allocation2] sm:$0xff]
    %v50 = vld [vmem:[#allocation7] sm:$0x3]
    %v51 = vld [vmem:[#allocation5] sm:$0xff]
    %53 = vst [vmem:[#allocation1] ss:$4 sm:$0xff] %v49
    %v54 = vld.sshfl [vmem:[#allocation1] sm:$0xff pattern:$0x73625140]
    %v55 = vld.sshfl [vmem:[#allocation1 + $0x8] sm:$0xff pattern:$0x73625140]
    %v56 = vld.sshfl [vmem:[#allocation1 + $0x10] sm:$0xff pattern:$0x73625140]
    %v57 = vld.sshfl [vmem:[#allocation1 + $0x18] sm:$0xff pattern:$0x73625140]
    %63 = vst [vmem:[#allocation1] ss:$4 sm:$0xff] %v51
    %v64 = vld.sshfl [vmem:[#allocation1] sm:$0xff pattern:$0x73625140]
    %v65 = vld.sshfl [vmem:[#allocation1 + $0x8] sm:$0xff pattern:$0x73625140]
    %v66 = vld.sshfl [vmem:[#allocation1 + $0x10] sm:$0xff pattern:$0x73625140]
    %v67 = vld.sshfl [vmem:[#allocation1 + $0x18] sm:$0xff pattern:$0x73625140]
    %72 = vmatpush.xpose.msra.mxu0 0.0
    %73 = vmatpush.xpose.msra.mxu0 0.0
    %74 = vmatpush.xpose.msra.mxu0 0.0
    %75 = vmatpush.xpose.msra.mxu0 0.0
    %76 = vmatpush.xpose.msra.mxu0 0.0
    %77 = vmatpush.xpose.msra.mxu0 0.0
    %78 = vmatpush.xpose.msra.mxu0 0.0
    %79 = vmatpush.xpose.msra.mxu0 0.0
    %80 = vmatpush.xpose.msra.mxu0 0.0
    %81 = vmatpush.xpose.msra.mxu0 0.0
    %82 = vmatpush.xpose.msra.mxu0 0.0
    %83 = vmatpush.xpose.msra.mxu0 0.0
    %84 = vmatpush.xpose.msra.mxu0 0.0
    %85 = vmatpush.xpose.msra.mxu0 0.0
    %86 = vmatpush.xpose.msra.mxu0 0.0
    %87 = vmatpush.xpose.msra.mxu0 %v64
    %88 = vmatmul.f32.gmra.mxu0 %v54
    %v89 = vpop.f32.mrf.mxu0
    %v90 = vadd.f32 0.0, %v89
    %91 = vdwg.mxu0
    %92 = vmatpush.xpose.msra.mxu0 0.0
    %93 = vmatpush.xpose.msra.mxu0 0.0
    %94 = vmatpush.xpose.msra.mxu0 0.0
    %95 = vmatpush.xpose.msra.mxu0 0.0
    %96 = vmatpush.xpose.msra.mxu0 0.0
    %97 = vmatpush.xpose.msra.mxu0 0.0
    %98 = vmatpush.xpose.msra.mxu0 0.0
    %99 = vmatpush.xpose.msra.mxu0 0.0
    %100 = vmatpush.xpose.msra.mxu0 0.0
    %101 = vmatpush.xpose.msra.mxu0 0.0
    %102 = vmatpush.xpose.msra.mxu0 0.0
    %103 = vmatpush.xpose.msra.mxu0 0.0
    %104 = vmatpush.xpose.msra.mxu0 0.0
    %105 = vmatpush.xpose.msra.mxu0 0.0
    %106 = vmatpush.xpose.msra.mxu0 0.0
    %107 = vmatpush.xpose.msra.mxu0 %v65
    %108 = vmatmul.f32.gmra.mxu0 %v55
    %v109 = vpop.f32.mrf.mxu0
    %v110 = vadd.f32 %v90, %v109
    %111 = vdwg.mxu0
    %112 = vmatpush.xpose.msra.mxu0 0.0
    %113 = vmatpush.xpose.msra.mxu0 0.0
    %114 = vmatpush.xpose.msra.mxu0 0.0
    %115 = vmatpush.xpose.msra.mxu0 0.0
    %116 = vmatpush.xpose.msra.mxu0 0.0
    %117 = vmatpush.xpose.msra.mxu0 0.0
    %118 = vmatpush.xpose.msra.mxu0 0.0
    %119 = vmatpush.xpose.msra.mxu0 0.0
    %120 = vmatpush.xpose.msra.mxu0 0.0
    %121 = vmatpush.xpose.msra.mxu0 0.0
    %122 = vmatpush.xpose.msra.mxu0 0.0
    %123 = vmatpush.xpose.msra.mxu0 0.0
    %124 = vmatpush.xpose.msra.mxu0 0.0
    %125 = vmatpush.xpose.msra.mxu0 0.0
    %126 = vmatpush.xpose.msra.mxu0 0.0
    %127 = vmatpush.xpose.msra.mxu0 %v66
    %128 = vmatmul.f32.gmra.mxu0 %v56
    %v129 = vpop.f32.mrf.mxu0
    %v130 = vadd.f32 %v110, %v129
    %131 = vdwg.mxu0
    %132 = vmatpush.xpose.msra.mxu0 0.0
    %133 = vmatpush.xpose.msra.mxu0 0.0
    %134 = vmatpush.xpose.msra.mxu0 0.0
    %135 = vmatpush.xpose.msra.mxu0 0.0
    %136 = vmatpush.xpose.msra.mxu0 0.0
    %137 = vmatpush.xpose.msra.mxu0 0.0
    %138 = vmatpush.xpose.msra.mxu0 0.0
    %139 = vmatpush.xpose.msra.mxu0 0.0
    %140 = vmatpush.xpose.msra.mxu0 0.0
    %141 = vmatpush.xpose.msra.mxu0 0.0
    %142 = vmatpush.xpose.msra.mxu0 0.0
    %143 = vmatpush.xpose.msra.mxu0 0.0
    %144 = vmatpush.xpose.msra.mxu0 0.0
    %145 = vmatpush.xpose.msra.mxu0 0.0
    %146 = vmatpush.xpose.msra.mxu0 0.0
    %147 = vmatpush.xpose.msra.mxu0 %v67
    %148 = vmatmul.f32.gmra.mxu0 %v57
    %v149 = vpop.f32.mrf.mxu0
    %v150 = vadd.f32 %v130, %v149
    %151 = vdwg.mxu0
    %v152 = vadd.f32 %v50, %v150
    %vm153 = vcmask 9216
    %154 = vst.msk [vmem:[#allocation7] sm:$0x3] %vm153, %v152
    // Predicated region
    $region26: #{tpu_custom_call.1} parent=1 // pred_check
      %p155 = pneg %p43
    $region27: #{tpu_custom_call.1} parent=1 // pred_check_branch
      %157 = sbr.rel (%p155) target = $region29
    $region28: #{tpu_custom_call.1} parent=1 // pred_region
      %v158 = vld [vmem:[#allocation7] sm:$0x3]
      %v159 = vld [vmem:[%s2] sm:$0x1]
      %v161 = vperm.slane %v159, 0
      %v163 = vadd.f32 %v158, %v161
      %164 = vst.msk [vmem:[#allocation7] sm:$0x3] %vm153, %v163
    $region29: #{tpu_custom_call.1} parent=1 // pred_fallthru
      _
    // Predicated region
    $region30: #{tpu_custom_call.1} parent=1 // pred_check
      _
    $region31: #{tpu_custom_call.1} parent=1 // pred_check_branch
      %166 = sbr.rel (0) target = $region33
    $region32: #{tpu_custom_call.1} parent=1 // pred_region
      %168 = vsyncadd [#allocation4], 0
      %s170 = sshll.u32 [#allocation7], 4
      %s171 = int_to_ptr.vmem [resolvable:$true] %s170
      %s172 = sshll.u32 %s3, 4
      %s173 = int_to_ptr.hbm [resolvable:$true] %s172
      %175 = dma.vmem_to_hbm [thread:$0]  %s171, 32, %s173, [#allocation4]
    $region33: #{tpu_custom_call.1} parent=1 // pred_fallthru
      _
    // Predicated region
    $region34: #{tpu_custom_call.1} parent=1 // pred_check
      _
    $region35: #{tpu_custom_call.1} parent=1 // pred_check_branch
      %177 = sbr.rel (0) target = $region37
    $region36: #{tpu_custom_call.1} parent=1 // pred_region
      %179 = dma.done [#allocation4], 32
    $region37: #{tpu_custom_call.1} parent=1 // pred_fallthru
      _
    %180 = vsyncpa [#allocation3], 1
    %181 = vsyncpa [#allocation6], 1
    %182 = vsyncpa [#allocation4], 1

</llo_original>
